<compile_context>
chip_gen: v5e
topology: v5e:2x2
jax: 0.10.0
libtpu: 0.0.40
codegen_flags: <defaults>
</compile_context>

<pallas_src>
import numpy as np
import jax
import jax.numpy as jnp
from jax import lax
from jax.experimental import pallas as pl
from jax.experimental.pallas import tpu as pltpu

EPS = 1e-5
NEG_SLOPE = 0.01


def _res_kernel(x_ref, w_ref, bn_ref, o_ref):
    # x_ref : (NB, H, WF)      lane-dense activation block (WF = W*F = 128)
    # w_ref : (2, 3, WF, WF)   banded conv weights, indexed [conv, ky, :, :]
    # bn_ref: (4, WF)          rows = scale1, shift1, scale2, shift2
    # o_ref : (NB, H, WF)
    NB, H, WF = x_ref.shape
    M = NB * H

    x = x_ref[...].reshape(M, WF)

    # H-border masks for the 3x3 halo.  They also kill roll wrap-around
    # across batch images, since wrapped rows land exactly on the masked
    # border rows.  Built once, reused by both convs.
    ridx = lax.broadcasted_iota(jnp.int32, (M, WF), 0)
    h = ridx % H
    first_row = h == 0
    last_row = h == H - 1

    s1 = bn_ref[0:1, :]
    t1 = bn_ref[1:2, :]
    s2 = bn_ref[2:3, :]
    t2 = bn_ref[3:4, :]

    def leaky(v):
        return jnp.where(v > 0, v, NEG_SLOPE * v)

    def conv3x3(u, c):
        # H shifts via XLU rolls (separate issue slot from MXU/VPU) — the
        # MXU then sees three K=128, N=128 matmuls per conv.
        u_dn = jnp.where(first_row, 0.0, pltpu.roll(u, shift=1, axis=0))
        u_up = jnp.where(last_row, 0.0, pltpu.roll(u, shift=M - 1, axis=0))
        acc = jnp.dot(u_dn, w_ref[c, 0], preferred_element_type=jnp.float32)
        acc = acc + jnp.dot(u, w_ref[c, 1], preferred_element_type=jnp.float32)
        acc = acc + jnp.dot(u_up, w_ref[c, 2], preferred_element_type=jnp.float32)
        return acc

    # BN1 -> LeakyReLU (vreg-resident FMA)
    u1 = leaky(x * s1 + t1)
    # Conv1
    c1 = conv3x3(u1, 0)
    # BN2 -> LeakyReLU fused as an epilogue on the conv1 accumulator
    u2 = leaky(c1 * s2 + t2)
    # Conv2
    c2 = conv3x3(u2, 1)
    # Residual add; lane-dense (WF = 128) unmasked stores.
    o_ref[...] = (x + c2).reshape(NB, H, WF)


def res_forward_pallas(x_nhwc, w_banded, bn_packed, *, batch_block=None):
    """x_nhwc: (N, H, W, F); w_banded: (2, 3, W*F, W*F); bn_packed: (4, W*F)."""
    N, H, W, F = x_nhwc.shape
    WF = W * F
    NB = N if batch_block is None else batch_block
    assert N % NB == 0

    x2 = x_nhwc.reshape(N, H, WF)          # lane-dense fold (layout plumbing)

    out2 = pl.pallas_call(
        _res_kernel,
        out_shape=jax.ShapeDtypeStruct((N, H, WF), jnp.float32),
        grid_spec=pltpu.PrefetchScalarGridSpec(
            num_scalar_prefetch=0,
            grid=(N // NB,),
            in_specs=[
                pl.BlockSpec((NB, H, WF), lambda b: (b, 0, 0)),
                pl.BlockSpec((2, 3, WF, WF), lambda b: (0, 0, 0, 0)),
                pl.BlockSpec((4, WF), lambda b: (0, 0)),
            ],
            out_specs=pl.BlockSpec((NB, H, WF), lambda b: (b, 0, 0)),
        ),
        compiler_params=pltpu.CompilerParams(
            dimension_semantics=("parallel",)),
    )(x2, w_banded, bn_packed)
    return out2.reshape(N, H, W, F)


def conv3x3_to_banded(w_oihw, W):
    """PyTorch OIHW (Cout, Cin, 3, 3) -> (3, W*Cin, W*Cout) banded matrices.

    B[ky][w_in*Cin + ci, w_out*Cout + co] = K[co, ci, ky, w_in - w_out + 1]
    for |w_in - w_out| <= 1; zero padding at the W borders is built in.
    """
    w = np.asarray(jax.device_get(w_oihw))
    Cout, Cin, KH, KW = w.shape
    B = np.zeros((KH, W * Cin, W * Cout), np.float32)
    for ky in range(KH):
        tap = np.transpose(w[:, :, ky, :], (1, 0, 2))   # (Cin, Cout, KW)
        for w_out in range(W):
            for kx in range(KW):
                w_in = w_out + kx - 1
                if 0 <= w_in < W:
                    B[ky,
                      w_in * Cin:(w_in + 1) * Cin,
                      w_out * Cout:(w_out + 1) * Cout] = tap[:, :, kx]
    return jnp.asarray(B)


def fold_bn(gamma, beta, mean, var, W):
    scale = gamma / jnp.sqrt(var + EPS)
    shift = beta - mean * scale
    # Tile over W so the vectors are lane-dense in the fused (w, f) axis.
    return jnp.tile(scale, W), jnp.tile(shift, W)


def pack_params(w1_oihw, w2_oihw, bn1, bn2, W):
    """Pack both convs + both BNs into single kernel inputs."""
    w_banded = jnp.stack([conv3x3_to_banded(w1_oihw, W),
                          conv3x3_to_banded(w2_oihw, W)], axis=0)
    s1, t1 = fold_bn(*bn1, W)
    s2, t2 = fold_bn(*bn2, W)
    bn_packed = jnp.stack([s1, t1, s2, t2], axis=0)
    return w_banded, bn_packed


def reference_forward(x_nhwc, w1_hwio, w2_hwio, bn1, bn2):
    """Pure-JAX reference (NHWC conv via lax) for correctness checking."""
    dn = ('NHWC', 'HWIO', 'NHWC')

    def conv(x, w):
        return lax.conv_general_dilated(x, w, (1, 1), 'SAME',
                                        dimension_numbers=dn)

    def bn(x, p):
        g, b, m, v = p
        return (x - m) / jnp.sqrt(v + EPS) * g + b

    def leaky(x):
        return jnp.where(x > 0, x, NEG_SLOPE * x)

    u = leaky(bn(x_nhwc, bn1))
    u = conv(u, w1_hwio)
    u = leaky(bn(u, bn2))
    u = conv(u, w2_hwio)
    return x_nhwc + u


if __name__ == "__main__":
    # Res(filters=8): input channels == filters; W*F = 16*8 = 128 so the
    # fused lane axis is exactly one vreg wide.
    N, F, H, W = 2, 8, 16, 16

    key = jax.random.PRNGKey(0)
    keys = jax.random.split(key, 11)

    # Input in PyTorch NCHW layout, converted to NHWC for the kernel.
    x_nchw = jax.random.normal(keys[0], (N, F, H, W), jnp.float32)
    x_nhwc = jnp.transpose(x_nchw, (0, 2, 3, 1))

    # Conv weights in PyTorch OIHW layout (bias=False in the module).
    w1_oihw = 0.2 * jax.random.normal(keys[1], (F, F, 3, 3), jnp.float32)
    w2_oihw = 0.2 * jax.random.normal(keys[2], (F, F, 3, 3), jnp.float32)

    # BatchNorm parameters (eval mode): gamma, beta, running_mean, running_var
    g1 = 1.0 + 0.1 * jax.random.normal(keys[3], (F,), jnp.float32)
    b1 = 0.1 * jax.random.normal(keys[4], (F,), jnp.float32)
    m1 = 0.1 * jax.random.normal(keys[5], (F,), jnp.float32)
    v1 = jax.random.uniform(keys[6], (F,), jnp.float32, 0.5, 1.5)
    g2 = 1.0 + 0.1 * jax.random.normal(keys[7], (F,), jnp.float32)
    b2 = 0.1 * jax.random.normal(keys[8], (F,), jnp.float32)
    m2 = 0.1 * jax.random.normal(keys[9], (F,), jnp.float32)
    v2 = jax.random.uniform(keys[10], (F,), jnp.float32, 0.5, 1.5)

    bn1 = (g1, b1, m1, v1)
    bn2 = (g2, b2, m2, v2)

    w_banded, bn_packed = pack_params(w1_oihw, w2_oihw, bn1, bn2, W)

    out = res_forward_pallas(x_nhwc, w_banded, bn_packed)
    out = jax.block_until_ready(out)

    def to_hwio(w):
        return jnp.transpose(w, (2, 3, 1, 0))   # (3,3,Cin,Cout)

    ref = reference_forward(x_nhwc, to_hwio(w1_oihw), to_hwio(w2_oihw),
                            bn1, bn2)
    ref = jax.block_until_ready(ref)

    assert out.shape == (N, H, W, F)
    max_err = float(jnp.max(jnp.abs(out - ref)))
    assert jnp.allclose(out, ref, atol=1e-4, rtol=1e-4), max_err

    print("KERNEL_OK")
</pallas_src>

<mosaic_0001>
module attributes {stable_mosaic.version = 11 : i64} {
  func.func @_res_kernel(%arg0: i32, %arg1: memref<2x16x128xf32, #tpu.memory_space<vmem>>, %arg2: memref<2x3x128x128xf32, #tpu.memory_space<vmem>>, %arg3: memref<4x128xf32, #tpu.memory_space<vmem>>, %arg4: memref<2x16x128xf32, #tpu.memory_space<vmem>>) attributes {dimension_semantics = [#tpu.dimension_semantics<parallel>], iteration_bounds = array<i64: 1>, scalar_prefetch = 0 : i64, scratch_operands = 0 : i64, tpu.core_type = #tpu.core_type<tc>, window_params = [{transform_indices = @transform_0, window_bounds = array<i64: 2, 16, 128>}, {pipeline_mode = #tpu.pipeline_mode<synchronous>, transform_indices = @transform_1, window_bounds = array<i64: 2, 3, 128, 128>}, {pipeline_mode = #tpu.pipeline_mode<synchronous>, transform_indices = @transform_2, window_bounds = array<i64: 4, 128>}, {transform_indices = @transform_3, window_bounds = array<i64: 2, 16, 128>}]} {
    %c0 = arith.constant 0 : index
    %c0_0 = arith.constant 0 : index
    %c0_1 = arith.constant 0 : index
    %0 = vector.load %arg1[%c0, %c0_0, %c0_1] : memref<2x16x128xf32, #tpu.memory_space<vmem>>, vector<2x16x128xf32>
    %1 = vector.shape_cast %0 : vector<2x16x128xf32> to vector<32x128xf32>
    %2 = tpu.iota {dimensions = array<i32: 0>} : vector<32x128xi32>
    %c16_i32 = arith.constant 16 : i32
    %c0_i32 = arith.constant 0 : i32
    %3 = arith.cmpi eq, %c16_i32, %c0_i32 : i32
    %c1_i32 = arith.constant 1 : i32
    %4 = arith.select %3, %c1_i32, %c16_i32 : i32
    %5 = vector.broadcast %4 : i32 to vector<32x128xi32>
    %6 = arith.remsi %2, %5 : vector<32x128xi32>
    %c0_i32_2 = arith.constant 0 : i32
    %7 = vector.broadcast %c0_i32_2 : i32 to vector<32x128xi32>
    %8 = arith.cmpi ne, %6, %7 : vector<32x128xi32>
    %c0_i32_3 = arith.constant 0 : i32
    %9 = vector.broadcast %c0_i32_3 : i32 to vector<32x128xi32>
    %10 = arith.cmpi slt, %6, %9 : vector<32x128xi32>
    %c0_i32_4 = arith.constant 0 : i32
    %11 = arith.cmpi slt, %4, %c0_i32_4 : i32
    %12 = vector.broadcast %11 : i1 to vector<32x128xi1>
    %13 = vector.broadcast %12 : vector<32x128xi1> to vector<32x128xi1>
    %14 = arith.xori %10, %13 : vector<32x128xi1>
    %15 = arith.andi %14, %8 : vector<32x128xi1>
    %16 = vector.broadcast %4 : i32 to vector<32x128xi32>
    %17 = arith.addi %6, %16 : vector<32x128xi32>
    %18 = arith.select %15, %17, %6 : vector<32x128xi1>, vector<32x128xi32>
    %c0_i32_5 = arith.constant 0 : i32
    %19 = vector.broadcast %c0_i32_5 : i32 to vector<32x128xi32>
    %20 = arith.cmpi eq, %18, %19 : vector<32x128xi32>
    %c15_i32 = arith.constant 15 : i32
    %21 = vector.broadcast %c15_i32 : i32 to vector<32x128xi32>
    %22 = arith.cmpi eq, %18, %21 : vector<32x128xi32>
    %c0_6 = arith.constant 0 : index
    %c0_7 = arith.constant 0 : index
    %23 = vector.load %arg3[%c0_6, %c0_7] : memref<4x128xf32, #tpu.memory_space<vmem>>, vector<1x128xf32>
    %c1 = arith.constant 1 : index
    %c0_8 = arith.constant 0 : index
    %24 = vector.load %arg3[%c1, %c0_8] : memref<4x128xf32, #tpu.memory_space<vmem>>, vector<1x128xf32>
    %c2 = arith.constant 2 : index
    %c0_9 = arith.constant 0 : index
    %25 = vector.load %arg3[%c2, %c0_9] : memref<4x128xf32, #tpu.memory_space<vmem>>, vector<1x128xf32>
    %c3 = arith.constant 3 : index
    %c0_10 = arith.constant 0 : index
    %26 = vector.load %arg3[%c3, %c0_10] : memref<4x128xf32, #tpu.memory_space<vmem>>, vector<1x128xf32>
    %27 = vector.broadcast %23 : vector<1x128xf32> to vector<32x128xf32>
    %28 = arith.mulf %1, %27 : vector<32x128xf32>
    %29 = vector.broadcast %24 : vector<1x128xf32> to vector<32x128xf32>
    %30 = arith.addf %28, %29 : vector<32x128xf32>
    %cst = arith.constant 0.000000e+00 : f32
    %31 = vector.broadcast %cst : f32 to vector<32x128xf32>
    %32 = arith.cmpf ogt, %30, %31 : vector<32x128xf32>
    %cst_11 = arith.constant 0.00999999977 : f32
    %33 = vector.broadcast %cst_11 : f32 to vector<32x128xf32>
    %34 = arith.mulf %33, %30 : vector<32x128xf32>
    %35 = arith.select %32, %30, %34 : vector<32x128xi1>, vector<32x128xf32>
    %c1_i32_12 = arith.constant 1 : i32
    %36 = tpu.dynamic_rotate %35 by %c1_i32_12 dim 0 : vector<32x128xf32>, i32 -> vector<32x128xf32>
    %cst_13 = arith.constant 0.000000e+00 : f32
    %37 = vector.broadcast %cst_13 : f32 to vector<32x128xf32>
    %38 = arith.select %20, %37, %36 : vector<32x128xi1>, vector<32x128xf32>
    %c31_i32 = arith.constant 31 : i32
    %39 = tpu.dynamic_rotate %35 by %c31_i32 dim 0 : vector<32x128xf32>, i32 -> vector<32x128xf32>
    %cst_14 = arith.constant 0.000000e+00 : f32
    %40 = vector.broadcast %cst_14 : f32 to vector<32x128xf32>
    %41 = arith.select %22, %40, %39 : vector<32x128xi1>, vector<32x128xf32>
    %c0_15 = arith.constant 0 : index
    %c0_16 = arith.constant 0 : index
    %c0_17 = arith.constant 0 : index
    %c0_18 = arith.constant 0 : index
    %42 = vector.load %arg2[%c0_15, %c0_16, %c0_17, %c0_18] : memref<2x3x128x128xf32, #tpu.memory_space<vmem>>, vector<1x1x128x128xf32>
    %43 = vector.shape_cast %42 : vector<1x1x128x128xf32> to vector<128x128xf32>
    %cst_19 = arith.constant dense<0.000000e+00> : vector<32x128xf32>
    %44 = tpu.matmul %38, %43, %cst_19 {dimension_numbers = #tpu.dot_dimension_numbers<[1], [0], [0], [1], [0, 0, 1, 1], [], []>} : vector<32x128xf32>, vector<128x128xf32>, vector<32x128xf32> -> vector<32x128xf32>
    %c0_20 = arith.constant 0 : index
    %c1_21 = arith.constant 1 : index
    %c0_22 = arith.constant 0 : index
    %c0_23 = arith.constant 0 : index
    %45 = vector.load %arg2[%c0_20, %c1_21, %c0_22, %c0_23] : memref<2x3x128x128xf32, #tpu.memory_space<vmem>>, vector<1x1x128x128xf32>
    %46 = vector.shape_cast %45 : vector<1x1x128x128xf32> to vector<128x128xf32>
    %cst_24 = arith.constant dense<0.000000e+00> : vector<32x128xf32>
    %47 = tpu.matmul %35, %46, %cst_24 {dimension_numbers = #tpu.dot_dimension_numbers<[1], [0], [0], [1], [0, 0, 1, 1], [], []>} : vector<32x128xf32>, vector<128x128xf32>, vector<32x128xf32> -> vector<32x128xf32>
    %48 = arith.addf %44, %47 : vector<32x128xf32>
    %c0_25 = arith.constant 0 : index
    %c2_26 = arith.constant 2 : index
    %c0_27 = arith.constant 0 : index
    %c0_28 = arith.constant 0 : index
    %49 = vector.load %arg2[%c0_25, %c2_26, %c0_27, %c0_28] : memref<2x3x128x128xf32, #tpu.memory_space<vmem>>, vector<1x1x128x128xf32>
    %50 = vector.shape_cast %49 : vector<1x1x128x128xf32> to vector<128x128xf32>
    %cst_29 = arith.constant dense<0.000000e+00> : vector<32x128xf32>
    %51 = tpu.matmul %41, %50, %cst_29 {dimension_numbers = #tpu.dot_dimension_numbers<[1], [0], [0], [1], [0, 0, 1, 1], [], []>} : vector<32x128xf32>, vector<128x128xf32>, vector<32x128xf32> -> vector<32x128xf32>
    %52 = arith.addf %48, %51 : vector<32x128xf32>
    %53 = vector.broadcast %25 : vector<1x128xf32> to vector<32x128xf32>
    %54 = arith.mulf %52, %53 : vector<32x128xf32>
    %55 = vector.broadcast %26 : vector<1x128xf32> to vector<32x128xf32>
    %56 = arith.addf %54, %55 : vector<32x128xf32>
    %cst_30 = arith.constant 0.000000e+00 : f32
    %57 = vector.broadcast %cst_30 : f32 to vector<32x128xf32>
    %58 = arith.cmpf ogt, %56, %57 : vector<32x128xf32>
    %cst_31 = arith.constant 0.00999999977 : f32
    %59 = vector.broadcast %cst_31 : f32 to vector<32x128xf32>
    %60 = arith.mulf %59, %56 : vector<32x128xf32>
    %61 = arith.select %58, %56, %60 : vector<32x128xi1>, vector<32x128xf32>
    %c1_i32_32 = arith.constant 1 : i32
    %62 = tpu.dynamic_rotate %61 by %c1_i32_32 dim 0 : vector<32x128xf32>, i32 -> vector<32x128xf32>
    %cst_33 = arith.constant 0.000000e+00 : f32
    %63 = vector.broadcast %cst_33 : f32 to vector<32x128xf32>
    %64 = arith.select %20, %63, %62 : vector<32x128xi1>, vector<32x128xf32>
    %c31_i32_34 = arith.constant 31 : i32
    %65 = tpu.dynamic_rotate %61 by %c31_i32_34 dim 0 : vector<32x128xf32>, i32 -> vector<32x128xf32>
    %cst_35 = arith.constant 0.000000e+00 : f32
    %66 = vector.broadcast %cst_35 : f32 to vector<32x128xf32>
    %67 = arith.select %22, %66, %65 : vector<32x128xi1>, vector<32x128xf32>
    %c1_36 = arith.constant 1 : index
    %c0_37 = arith.constant 0 : index
    %c0_38 = arith.constant 0 : index
    %c0_39 = arith.constant 0 : index
    %68 = vector.load %arg2[%c1_36, %c0_37, %c0_38, %c0_39] : memref<2x3x128x128xf32, #tpu.memory_space<vmem>>, vector<1x1x128x128xf32>
    %69 = vector.shape_cast %68 : vector<1x1x128x128xf32> to vector<128x128xf32>
    %cst_40 = arith.constant dense<0.000000e+00> : vector<32x128xf32>
    %70 = tpu.matmul %64, %69, %cst_40 {dimension_numbers = #tpu.dot_dimension_numbers<[1], [0], [0], [1], [0, 0, 1, 1], [], []>} : vector<32x128xf32>, vector<128x128xf32>, vector<32x128xf32> -> vector<32x128xf32>
    %c1_41 = arith.constant 1 : index
    %c1_42 = arith.constant 1 : index
    %c0_43 = arith.constant 0 : index
    %c0_44 = arith.constant 0 : index
    %71 = vector.load %arg2[%c1_41, %c1_42, %c0_43, %c0_44] : memref<2x3x128x128xf32, #tpu.memory_space<vmem>>, vector<1x1x128x128xf32>
    %72 = vector.shape_cast %71 : vector<1x1x128x128xf32> to vector<128x128xf32>
    %cst_45 = arith.constant dense<0.000000e+00> : vector<32x128xf32>
    %73 = tpu.matmul %61, %72, %cst_45 {dimension_numbers = #tpu.dot_dimension_numbers<[1], [0], [0], [1], [0, 0, 1, 1], [], []>} : vector<32x128xf32>, vector<128x128xf32>, vector<32x128xf32> -> vector<32x128xf32>
    %74 = arith.addf %70, %73 : vector<32x128xf32>
    %c1_46 = arith.constant 1 : index
    %c2_47 = arith.constant 2 : index
    %c0_48 = arith.constant 0 : index
    %c0_49 = arith.constant 0 : index
    %75 = vector.load %arg2[%c1_46, %c2_47, %c0_48, %c0_49] : memref<2x3x128x128xf32, #tpu.memory_space<vmem>>, vector<1x1x128x128xf32>
    %76 = vector.shape_cast %75 : vector<1x1x128x128xf32> to vector<128x128xf32>
    %cst_50 = arith.constant dense<0.000000e+00> : vector<32x128xf32>
    %77 = tpu.matmul %67, %76, %cst_50 {dimension_numbers = #tpu.dot_dimension_numbers<[1], [0], [0], [1], [0, 0, 1, 1], [], []>} : vector<32x128xf32>, vector<128x128xf32>, vector<32x128xf32> -> vector<32x128xf32>
    %78 = arith.addf %74, %77 : vector<32x128xf32>
    %79 = arith.addf %1, %78 : vector<32x128xf32>
    %80 = vector.shape_cast %79 : vector<32x128xf32> to vector<2x16x128xf32>
    %c0_51 = arith.constant 0 : index
    %c0_52 = arith.constant 0 : index
    %c0_53 = arith.constant 0 : index
    %81 = vector.load %arg4[%c0_51, %c0_52, %c0_53] : memref<2x16x128xf32, #tpu.memory_space<vmem>>, vector<2x16x128xf32>
    tpu.vector_store %arg4[%c0_51, %c0_52, %c0_53], %80 {strides = array<i32>} : memref<2x16x128xf32, #tpu.memory_space<vmem>>, vector<2x16x128xf32>,
    return
  }
  func.func @transform_0(%arg0: i32) -> (i32, i32, i32) {
    %c0_i32 = arith.constant 0 : i32
    %c0_i32_0 = arith.constant 0 : i32
    %c0_i32_1 = arith.constant 0 : i32
    return %arg0, %c0_i32, %c0_i32_0 : i32, i32, i32
  }
  func.func @transform_1(%arg0: i32) -> (i32, i32, i32, i32) {
    %c0_i32 = arith.constant 0 : i32
    %c0_i32_0 = arith.constant 0 : i32
    %c0_i32_1 = arith.constant 0 : i32
    %c0_i32_2 = arith.constant 0 : i32
    %c0_i32_3 = arith.constant 0 : i32
    return %c0_i32, %c0_i32_0, %c0_i32_1, %c0_i32_2 : i32, i32, i32, i32
  }
  func.func @transform_2(%arg0: i32) -> (i32, i32) {
    %c0_i32 = arith.constant 0 : i32
    %c0_i32_0 = arith.constant 0 : i32
    %c0_i32_1 = arith.constant 0 : i32
    return %c0_i32, %c0_i32_0 : i32, i32
  }
  func.func @transform_3(%arg0: i32) -> (i32, i32, i32) {
    %c0_i32 = arith.constant 0 : i32
    %c0_i32_0 = arith.constant 0 : i32
    %c0_i32_1 = arith.constant 0 : i32
    return %arg0, %c0_i32, %c0_i32_0 : i32, i32, i32
  }
}

</mosaic_0001>

<llo_original>
// kernel: tpu_custom_call.1
$region0: #{tpu_custom_call.1}
  #allocation0 [shape = 'u32[]', space=smem, size = 0x4, offset = 0x4, fixed_abs, tag = 'smem constant byte address 0x4 - core index']
  #allocation1 [shape = 'u32[72,128]{1,0:T(1,128)}', space=vmem, size = 0x9000, scoped, tag = 'internal scratch']
  %s0 = inlined_call_operand.hbm [shape: f32[2,16,128], index: 0, kind: input, shape index: {}]
  %s1 = inlined_call_operand.hbm [shape: f32[2,3,128,128], index: 1, kind: input, shape index: {}]
  %s2 = inlined_call_operand.hbm [shape: f32[4,128], index: 2, kind: input, shape index: {}]
  %s3 = inlined_call_operand.hbm [shape: f32[2,16,128], index: 3, kind: output, shape index: {}]
  %s4 = sld [smem:[#allocation0]]
  $region34: #{tpu_custom_call.1} parent=0
    _
  %s6 = ssub.s32 1, %s4
  %s7 = scalar_select 0, %s6, %s4
  $region1: #{tpu_custom_call.1} parent=0
    #allocation2 [shape = 'u8[16384]{0}', space=vmem, size = 0x4000, scoped, tag = 'input window, operand 0, single buffered']
    #allocation3 [shape = 's32[1]{0}', space=sflag, size = 0x4, scoped, tag = 'scoped memory for tpu_custom_call.1']
    #allocation4 [shape = 's32[1]{0}', space=sflag, size = 0x4, scoped, tag = 'scoped memory for tpu_custom_call.1']
    #allocation5 [shape = 'u8[393216]{0}', space=vmem, size = 0x60000, scoped, tag = 'input window, operand 1, single buffered']
    #allocation6 [shape = 's32[1]{0}', space=sflag, size = 0x4, scoped, tag = 'scoped memory for tpu_custom_call.1']
    #allocation7 [shape = 'u8[2048]{0}', space=vmem, size = 0x800, scoped, tag = 'input window, operand 2, single buffered']
    #allocation8 [shape = 'u8[16384]{0}', space=vmem, size = 0x4000, scoped, tag = 'output window, operand 0, single buffered']
    %8 = vsyncpa [#allocation3], 0
    %9 = vsyncpa [#allocation6], 0
    %10 = vsyncpa [#allocation4], 0
    // Predicated region
    $region2: #{tpu_custom_call.1} parent=1 // pred_check
      _
    $region3: #{tpu_custom_call.1} parent=1 // pred_check_branch
      %12 = sbr.rel (0) target = $region5
    $region4: #{tpu_custom_call.1} parent=1 // pred_region
      %14 = vsyncadd [#allocation3], 0
      %s15 = sshll.u32 %s0, 4
      %s16 = int_to_ptr.hbm [resolvable:$true] %s15
      %s17 = sshll.u32 [#allocation2], 4
      %s18 = int_to_ptr.vmem [resolvable:$true] %s17
      %23 = dma.hbm_to_vmem [thread:$0]  %s16, 512, %s18, [#allocation3], 128, 128, 8
    $region5: #{tpu_custom_call.1} parent=1 // pred_fallthru
      _
    // Predicated region
    $region6: #{tpu_custom_call.1} parent=1 // pred_check
      _
    $region7: #{tpu_custom_call.1} parent=1 // pred_check_branch
      %25 = sbr.rel (0) target = $region9
    $region8: #{tpu_custom_call.1} parent=1 // pred_region
      %27 = vsyncadd [#allocation6], 0
      %s28 = sshll.u32 %s1, 4
      %s29 = int_to_ptr.hbm [resolvable:$true] %s28
      %s30 = sshll.u32 [#allocation5], 4
      %s31 = int_to_ptr.vmem [resolvable:$true] %s30
      %36 = dma.hbm_to_vmem [thread:$0]  %s29, 12288, %s31, [#allocation6], 128, 128, 8
    $region9: #{tpu_custom_call.1} parent=1 // pred_fallthru
      _
    // Predicated region
    $region10: #{tpu_custom_call.1} parent=1 // pred_check
      _
    $region11: #{tpu_custom_call.1} parent=1 // pred_check_branch
      %38 = sbr.rel (0) target = $region13
    $region12: #{tpu_custom_call.1} parent=1 // pred_region
      %40 = vsyncadd [#allocation6], 0
      %s42 = sshll.u32 %s2, 4
      %s43 = int_to_ptr.hbm [resolvable:$true] %s42
      %s44 = sshll.u32 [#allocation7], 4
      %s45 = int_to_ptr.vmem [resolvable:$true] %s44
      %47 = dma.hbm_to_vmem [thread:$0]  %s43, 64, %s45, [#allocation6]
    $region13: #{tpu_custom_call.1} parent=1 // pred_fallthru
      _
    // Predicated region
    $region14: #{tpu_custom_call.1} parent=1 // pred_check
      _
    $region15: #{tpu_custom_call.1} parent=1 // pred_check_branch
      %49 = sbr.rel (0) target = $region17
    $region16: #{tpu_custom_call.1} parent=1 // pred_region
      %51 = dma.done [#allocation3], 512
    $region17: #{tpu_custom_call.1} parent=1 // pred_fallthru
      _
    // Predicated region
    $region18: #{tpu_custom_call.1} parent=1 // pred_check
      _
    $region19: #{tpu_custom_call.1} parent=1 // pred_check_branch
      %53 = sbr.rel (0) target = $region21
    $region20: #{tpu_custom_call.1} parent=1 // pred_region
      %55 = dma.done [#allocation6], 12288
    $region21: #{tpu_custom_call.1} parent=1 // pred_fallthru
      _
    // Predicated region
    $region22: #{tpu_custom_call.1} parent=1 // pred_check
      _
    $region23: #{tpu_custom_call.1} parent=1 // pred_check_branch
      %57 = sbr.rel (0) target = $region25
    $region24: #{tpu_custom_call.1} parent=1 // pred_region
      %59 = dma.done [#allocation6], 64
    $region25: #{tpu_custom_call.1} parent=1 // pred_fallthru
      _
    %v60 = vld [vmem:[#allocation2] sm:$0xff]
    %v61 = vld [vmem:[#allocation2 + $0x8] sm:$0xff]
    %v62 = vld [vmem:[#allocation2 + $0x10] sm:$0xff]
    %v63 = vld [vmem:[#allocation2 + $0x18] sm:$0xff]
    %v64 = vlaneseq
    %v65 = vshrl.u32 %v64, 7
    %v66 = vadd.s32 %v65, 8
    %v67 = vadd.s32 %v65, 16
    %v68 = vadd.s32 %v65, 24
    %vm69 = vcmp.lt.s32.totalorder %v65, 0
    %v70 = vsub.s32 0, %v65
    %v71 = vsel %vm69, %v70, %v65
    %v72 = vshrl.u32 %v71, 4
    %v73 = vand.u32 %v71, 15
    %v74 = vsub.s32 0, %v73
    %v75 = vsel %vm69, %v74, %v73
    %vm76 = vcmp.lt.s32.totalorder %v66, 0
    %v77 = vsub.s32 0, %v66
    %v78 = vsel %vm76, %v77, %v66
    %v79 = vshrl.u32 %v78, 4
    %v80 = vand.u32 %v78, 15
    %v81 = vsub.s32 0, %v80
    %v82 = vsel %vm76, %v81, %v80
    %vm83 = vcmp.lt.s32.totalorder %v67, 0
    %v84 = vsub.s32 0, %v67
    %v85 = vsel %vm83, %v84, %v67
    %v86 = vshrl.u32 %v85, 4
    %v87 = vand.u32 %v85, 15
    %v88 = vsub.s32 0, %v87
    %v89 = vsel %vm83, %v88, %v87
    %vm90 = vcmp.lt.s32.totalorder %v68, 0
    %v91 = vsub.s32 0, %v68
    %v92 = vsel %vm90, %v91, %v68
    %v93 = vshrl.u32 %v92, 4
    %v94 = vand.u32 %v92, 15
    %v95 = vsub.s32 0, %v94
    %v96 = vsel %vm90, %v95, %v94
    %vm97 = vcmp.ne.s32.totalorder %v75, 0
    %vm98 = vcmp.ne.s32.totalorder %v82, 0
    %vm99 = vcmp.ne.s32.totalorder %v89, 0
    %vm100 = vcmp.ne.s32.totalorder %v96, 0
    %vm101 = vcmp.lt.s32.totalorder %v75, 0
    %vm102 = vcmp.lt.s32.totalorder %v82, 0
    %vm103 = vcmp.lt.s32.totalorder %v89, 0
    %vm104 = vcmp.lt.s32.totalorder %v96, 0
    %vm105 = vmand %vm101, %vm97
    %vm106 = vmand %vm102, %vm98
    %vm107 = vmand %vm103, %vm99
    %vm108 = vmand %vm104, %vm100
    %v109 = vadd.s32 %v75, 16
    %v110 = vadd.s32 %v82, 16
    %v111 = vadd.s32 %v89, 16
    %v112 = vadd.s32 %v96, 16
    %v113 = vsel %vm105, %v109, %v75
    %v114 = vsel %vm106, %v110, %v82
    %v115 = vsel %vm107, %v111, %v89
    %v116 = vsel %vm108, %v112, %v96
    %vm117 = vcmp.eq.s32.totalorder %v113, 0
    %vm118 = vcmp.eq.s32.totalorder %v114, 0
    %vm119 = vcmp.eq.s32.totalorder %v115, 0
    %vm120 = vcmp.eq.s32.totalorder %v116, 0
    %vm121 = vcmp.eq.s32.totalorder %v113, 15
    %vm122 = vcmp.eq.s32.totalorder %v114, 15
    %vm123 = vcmp.eq.s32.totalorder %v115, 15
    %vm124 = vcmp.eq.s32.totalorder %v116, 15
    %v125 = vld [vmem:[#allocation7] sm:$0x1]
    %v126 = vld [vmem:[#allocation7 + $0x1] sm:$0x1]
    %v127 = vld [vmem:[#allocation7 + $0x2] sm:$0x1]
    %v128 = vld [vmem:[#allocation7 + $0x3] sm:$0x1]
    %v129 = vperm.slane %v125, 0
    %v130 = vmul.f32 %v60, %v129
    %v131 = vmul.f32 %v61, %v129
    %v132 = vmul.f32 %v62, %v129
    %v133 = vmul.f32 %v63, %v129
    %v134 = vperm.slane %v126, 0
    %v135 = vadd.f32 %v130, %v134
    %v136 = vadd.f32 %v131, %v134
    %v137 = vadd.f32 %v132, %v134
    %v138 = vadd.f32 %v133, %v134
    %vm139 = vcmp.gt.f32.partialorder %v135, 0.0
    %vm140 = vcmp.gt.f32.partialorder %v136, 0.0
    %vm141 = vcmp.gt.f32.partialorder %v137, 0.0
    %vm142 = vcmp.gt.f32.partialorder %v138, 0.0
    %v143 = vmul.f32 %v135, 0.01
    %v144 = vmul.f32 %v136, 0.01
    %v145 = vmul.f32 %v137, 0.01
    %v146 = vmul.f32 %v138, 0.01
    %v147 = vsel %vm139, %v135, %v143
    %v148 = vsel %vm140, %v136, %v144
    %v149 = vsel %vm141, %v137, %v145
    %v150 = vsel %vm142, %v138, %v146
    %v151 = vrot.slane %v147, 7
    %v152 = vrot.slane %v148, 7
    %v153 = vrot.slane %v149, 7
    %v154 = vrot.slane %v150, 7
    %vm155 = vcmp.lt.s32.totalorder %v65, 1
    %v156 = vsel %vm155, %v153, %v154
    %v157 = vsel %vm155, %v152, %v153
    %v158 = vsel %vm155, %v151, %v152
    %v159 = vsel %vm155, %v154, %v151
    %v160 = vsel %vm117, 0.0, %v159
    %v161 = vsel %vm118, 0.0, %v158
    %v162 = vsel %vm119, 0.0, %v157
    %v163 = vsel %vm120, 0.0, %v156
    %v164 = vrot.slane %v147, 1
    %v165 = vrot.slane %v148, 1
    %v166 = vrot.slane %v149, 1
    %v167 = vrot.slane %v150, 1
    %vm168 = vcmp.lt.s32.totalorder %v65, 7
    %v169 = vsel %vm168, %v166, %v167
    %v170 = vsel %vm168, %v165, %v166
    %v171 = vsel %vm168, %v164, %v165
    %v172 = vsel %vm168, %v167, %v164
    %v173 = vsel %vm121, 0.0, %v171
    %v174 = vsel %vm122, 0.0, %v170
    %v175 = vsel %vm123, 0.0, %v169
    %v176 = vsel %vm124, 0.0, %v172
    %v177 = vld [vmem:[#allocation5] sm:$0xff]
    %v178 = vld [vmem:[#allocation5 + $0x8] sm:$0xff]
    %v179 = vld [vmem:[#allocation5 + $0x10] sm:$0xff]
    %v180 = vld [vmem:[#allocation5 + $0x18] sm:$0xff]
    %v181 = vld [vmem:[#allocation5 + $0x20] sm:$0xff]
    %v182 = vld [vmem:[#allocation5 + $0x28] sm:$0xff]
    %v183 = vld [vmem:[#allocation5 + $0x30] sm:$0xff]
    %v184 = vld [vmem:[#allocation5 + $0x38] sm:$0xff]
    %v185 = vld [vmem:[#allocation5 + $0x40] sm:$0xff]
    %v186 = vld [vmem:[#allocation5 + $0x48] sm:$0xff]
    %v187 = vld [vmem:[#allocation5 + $0x50] sm:$0xff]
    %v188 = vld [vmem:[#allocation5 + $0x58] sm:$0xff]
    %v189 = vld [vmem:[#allocation5 + $0x60] sm:$0xff]
    %v190 = vld [vmem:[#allocation5 + $0x68] sm:$0xff]
    %v191 = vld [vmem:[#allocation5 + $0x70] sm:$0xff]
    %v192 = vld [vmem:[#allocation5 + $0x78] sm:$0xff]
    %s193 = scalar_lea.vmem [#allocation5], 128
    %v194 = vld [vmem:[%s193] sm:$0xff]
    %v195 = vld [vmem:[%s193 + $0x8] sm:$0xff]
    %v196 = vld [vmem:[%s193 + $0x10] sm:$0xff]
    %v197 = vld [vmem:[%s193 + $0x18] sm:$0xff]
    %v198 = vld [vmem:[%s193 + $0x20] sm:$0xff]
    %v199 = vld [vmem:[%s193 + $0x28] sm:$0xff]
    %v200 = vld [vmem:[%s193 + $0x30] sm:$0xff]
    %v201 = vld [vmem:[%s193 + $0x38] sm:$0xff]
    %v202 = vld [vmem:[%s193 + $0x40] sm:$0xff]
    %v203 = vld [vmem:[%s193 + $0x48] sm:$0xff]
    %v204 = vld [vmem:[%s193 + $0x50] sm:$0xff]
    %v205 = vld [vmem:[%s193 + $0x58] sm:$0xff]
    %v206 = vld [vmem:[%s193 + $0x60] sm:$0xff]
    %v207 = vld [vmem:[%s193 + $0x68] sm:$0xff]
    %v208 = vld [vmem:[%s193 + $0x70] sm:$0xff]
    %v209 = vld [vmem:[%s193 + $0x78] sm:$0xff]
    %210 = vmatpush.msra.mxu0 %v209
    %211 = vmatpush.msra.mxu0 %v208
    %212 = vmatpush.msra.mxu0 %v207
    %213 = vmatpush.msra.mxu0 %v206
    %214 = vmatpush.msra.mxu0 %v205
    %215 = vmatpush.msra.mxu0 %v204
    %216 = vmatpush.msra.mxu0 %v203
    %217 = vmatpush.msra.mxu0 %v202
    %218 = vmatpush.msra.mxu0 %v201
    %219 = vmatpush.msra.mxu0 %v200
    %220 = vmatpush.msra.mxu0 %v199
    %221 = vmatpush.msra.mxu0 %v198
    %222 = vmatpush.msra.mxu0 %v197
    %223 = vmatpush.msra.mxu0 %v196
    %224 = vmatpush.msra.mxu0 %v195
    %225 = vmatpush.msra.mxu0 %v194
    %226 = vmatmul.f32.gmra.mxu0 %v147
    %v227 = vpop.f32.mrf.mxu0
    %v228 = vadd.f32 0.0, %v227
    %229 = vmatmul.f32.gmra.mxu0 %v148
    %v230 = vpop.f32.mrf.mxu0
    %v231 = vadd.f32 0.0, %v230
    %232 = vmatmul.f32.gmra.mxu0 %v149
    %v233 = vpop.f32.mrf.mxu0
    %v234 = vadd.f32 0.0, %v233
    %235 = vmatmul.f32.gmra.mxu0 %v150
    %v236 = vpop.f32.mrf.mxu0
    %v237 = vadd.f32 0.0, %v236
    %238 = vdwg.mxu0
    %239 = vmatpush.msra.mxu0 %v192
    %240 = vmatpush.msra.mxu0 %v191
    %241 = vmatpush.msra.mxu0 %v190
    %242 = vmatpush.msra.mxu0 %v189
    %243 = vmatpush.msra.mxu0 %v188
    %244 = vmatpush.msra.mxu0 %v187
    %245 = vmatpush.msra.mxu0 %v186
    %246 = vmatpush.msra.mxu0 %v185
    %247 = vmatpush.msra.mxu0 %v184
    %248 = vmatpush.msra.mxu0 %v183
    %249 = vmatpush.msra.mxu0 %v182
    %250 = vmatpush.msra.mxu0 %v181
    %251 = vmatpush.msra.mxu0 %v180
    %252 = vmatpush.msra.mxu0 %v179
    %253 = vmatpush.msra.mxu0 %v178
    %254 = vmatpush.msra.mxu0 %v177
    %255 = vmatmul.f32.gmra.mxu0 %v160
    %v256 = vpop.f32.mrf.mxu0
    %v257 = vadd.f32 %v228, %v256
    %258 = vmatmul.f32.gmra.mxu0 %v161
    %v259 = vpop.f32.mrf.mxu0
    %v260 = vadd.f32 %v231, %v259
    %261 = vmatmul.f32.gmra.mxu0 %v162
    %v262 = vpop.f32.mrf.mxu0
    %v263 = vadd.f32 %v234, %v262
    %264 = vmatmul.f32.gmra.mxu0 %v163
    %v265 = vpop.f32.mrf.mxu0
    %v266 = vadd.f32 %v237, %v265
    %267 = vdwg.mxu0
    %s268 = scalar_lea.vmem [#allocation5], 256
    %v269 = vld [vmem:[%s268] sm:$0xff]
    %v270 = vld [vmem:[%s268 + $0x8] sm:$0xff]
    %v271 = vld [vmem:[%s268 + $0x10] sm:$0xff]
    %v272 = vld [vmem:[%s268 + $0x18] sm:$0xff]
    %v273 = vld [vmem:[%s268 + $0x20] sm:$0xff]
    %v274 = vld [vmem:[%s268 + $0x28] sm:$0xff]
    %v275 = vld [vmem:[%s268 + $0x30] sm:$0xff]
    %v276 = vld [vmem:[%s268 + $0x38] sm:$0xff]
    %v277 = vld [vmem:[%s268 + $0x40] sm:$0xff]
    %v278 = vld [vmem:[%s268 + $0x48] sm:$0xff]
    %v279 = vld [vmem:[%s268 + $0x50] sm:$0xff]
    %v280 = vld [vmem:[%s268 + $0x58] sm:$0xff]
    %v281 = vld [vmem:[%s268 + $0x60] sm:$0xff]
    %v282 = vld [vmem:[%s268 + $0x68] sm:$0xff]
    %v283 = vld [vmem:[%s268 + $0x70] sm:$0xff]
    %v284 = vld [vmem:[%s268 + $0x78] sm:$0xff]
    %285 = vmatpush.msra.mxu0 %v284
    %286 = vmatpush.msra.mxu0 %v283
    %287 = vmatpush.msra.mxu0 %v282
    %288 = vmatpush.msra.mxu0 %v281
    %289 = vmatpush.msra.mxu0 %v280
    %290 = vmatpush.msra.mxu0 %v279
    %291 = vmatpush.msra.mxu0 %v278
    %292 = vmatpush.msra.mxu0 %v277
    %293 = vmatpush.msra.mxu0 %v276
    %294 = vmatpush.msra.mxu0 %v275
    %295 = vmatpush.msra.mxu0 %v274
    %296 = vmatpush.msra.mxu0 %v273
    %297 = vmatpush.msra.mxu0 %v272
    %298 = vmatpush.msra.mxu0 %v271
    %299 = vmatpush.msra.mxu0 %v270
    %300 = vmatpush.msra.mxu0 %v269
    %301 = vmatmul.f32.gmra.mxu0 %v173
    %v302 = vpop.f32.mrf.mxu0
    %v303 = vadd.f32 0.0, %v302
    %304 = vmatmul.f32.gmra.mxu0 %v174
    %v305 = vpop.f32.mrf.mxu0
    %v306 = vadd.f32 0.0, %v305
    %307 = vmatmul.f32.gmra.mxu0 %v175
    %v308 = vpop.f32.mrf.mxu0
    %v309 = vadd.f32 0.0, %v308
    %310 = vmatmul.f32.gmra.mxu0 %v176
    %v311 = vpop.f32.mrf.mxu0
    %v312 = vadd.f32 0.0, %v311
    %313 = vdwg.mxu0
    %v314 = vadd.f32 %v257, %v303
    %v315 = vadd.f32 %v260, %v306
    %v316 = vadd.f32 %v263, %v309
    %v317 = vadd.f32 %v266, %v312
    %v318 = vperm.slane %v127, 0
    %v319 = vmul.f32 %v314, %v318
    %v320 = vmul.f32 %v315, %v318
    %v321 = vmul.f32 %v316, %v318
    %v322 = vmul.f32 %v317, %v318
    %v323 = vperm.slane %v128, 0
    %v324 = vadd.f32 %v319, %v323
    %v325 = vadd.f32 %v320, %v323
    %v326 = vadd.f32 %v321, %v323
    %v327 = vadd.f32 %v322, %v323
    %vm328 = vcmp.gt.f32.partialorder %v324, 0.0
    %vm329 = vcmp.gt.f32.partialorder %v325, 0.0
    %vm330 = vcmp.gt.f32.partialorder %v326, 0.0
    %vm331 = vcmp.gt.f32.partialorder %v327, 0.0
    %v332 = vmul.f32 %v324, 0.01
    %v333 = vmul.f32 %v325, 0.01
    %v334 = vmul.f32 %v326, 0.01
    %v335 = vmul.f32 %v327, 0.01
    %v336 = vsel %vm328, %v324, %v332
    %v337 = vsel %vm329, %v325, %v333
    %v338 = vsel %vm330, %v326, %v334
    %v339 = vsel %vm331, %v327, %v335
    %v340 = vrot.slane %v336, 7
    %v341 = vrot.slane %v337, 7
    %v342 = vrot.slane %v338, 7
    %v343 = vrot.slane %v339, 7
    %v344 = vsel %vm155, %v342, %v343
    %v345 = vsel %vm155, %v341, %v342
    %v346 = vsel %vm155, %v340, %v341
    %v347 = vsel %vm155, %v343, %v340
    %v348 = vsel %vm117, 0.0, %v347
    %v349 = vsel %vm118, 0.0, %v346
    %v350 = vsel %vm119, 0.0, %v345
    %v351 = vsel %vm120, 0.0, %v344
    %v352 = vrot.slane %v336, 1
    %v353 = vrot.slane %v337, 1
    %v354 = vrot.slane %v338, 1
    %v355 = vrot.slane %v339, 1
    %v356 = vsel %vm168, %v354, %v355
    %v357 = vsel %vm168, %v353, %v354
    %v358 = vsel %vm168, %v352, %v353
    %v359 = vsel %vm168, %v355, %v352
    %v360 = vsel %vm121, 0.0, %v358
    %v361 = vsel %vm122, 0.0, %v357
    %v362 = vsel %vm123, 0.0, %v356
    %v363 = vsel %vm124, 0.0, %v359
    %s364 = scalar_lea.vmem [#allocation5], 384
    %v365 = vld [vmem:[%s364] sm:$0xff]
    %v366 = vld [vmem:[%s364 + $0x8] sm:$0xff]
    %v367 = vld [vmem:[%s364 + $0x10] sm:$0xff]
    %v368 = vld [vmem:[%s364 + $0x18] sm:$0xff]
    %v369 = vld [vmem:[%s364 + $0x20] sm:$0xff]
    %v370 = vld [vmem:[%s364 + $0x28] sm:$0xff]
    %v371 = vld [vmem:[%s364 + $0x30] sm:$0xff]
    %v372 = vld [vmem:[%s364 + $0x38] sm:$0xff]
    %v373 = vld [vmem:[%s364 + $0x40] sm:$0xff]
    %v374 = vld [vmem:[%s364 + $0x48] sm:$0xff]
    %v375 = vld [vmem:[%s364 + $0x50] sm:$0xff]
    %v376 = vld [vmem:[%s364 + $0x58] sm:$0xff]
    %v377 = vld [vmem:[%s364 + $0x60] sm:$0xff]
    %v378 = vld [vmem:[%s364 + $0x68] sm:$0xff]
    %v379 = vld [vmem:[%s364 + $0x70] sm:$0xff]
    %v380 = vld [vmem:[%s364 + $0x78] sm:$0xff]
    %s381 = scalar_lea.vmem [#allocation5], 512
    %v382 = vld [vmem:[%s381] sm:$0xff]
    %v383 = vld [vmem:[%s381 + $0x8] sm:$0xff]
    %v384 = vld [vmem:[%s381 + $0x10] sm:$0xff]
    %v385 = vld [vmem:[%s381 + $0x18] sm:$0xff]
    %v386 = vld [vmem:[%s381 + $0x20] sm:$0xff]
    %v387 = vld [vmem:[%s381 + $0x28] sm:$0xff]
    %v388 = vld [vmem:[%s381 + $0x30] sm:$0xff]
    %v389 = vld [vmem:[%s381 + $0x38] sm:$0xff]
    %v390 = vld [vmem:[%s381 + $0x40] sm:$0xff]
    %v391 = vld [vmem:[%s381 + $0x48] sm:$0xff]
    %v392 = vld [vmem:[%s381 + $0x50] sm:$0xff]
    %v393 = vld [vmem:[%s381 + $0x58] sm:$0xff]
    %v394 = vld [vmem:[%s381 + $0x60] sm:$0xff]
    %v395 = vld [vmem:[%s381 + $0x68] sm:$0xff]
    %v396 = vld [vmem:[%s381 + $0x70] sm:$0xff]
    %v397 = vld [vmem:[%s381 + $0x78] sm:$0xff]
    %398 = vmatpush.msra.mxu0 %v397
    %399 = vmatpush.msra.mxu0 %v396
    %400 = vmatpush.msra.mxu0 %v395
    %401 = vmatpush.msra.mxu0 %v394
    %402 = vmatpush.msra.mxu0 %v393
    %403 = vmatpush.msra.mxu0 %v392
    %404 = vmatpush.msra.mxu0 %v391
    %405 = vmatpush.msra.mxu0 %v390
    %406 = vmatpush.msra.mxu0 %v389
    %407 = vmatpush.msra.mxu0 %v388
    %408 = vmatpush.msra.mxu0 %v387
    %409 = vmatpush.msra.mxu0 %v386
    %410 = vmatpush.msra.mxu0 %v385
    %411 = vmatpush.msra.mxu0 %v384
    %412 = vmatpush.msra.mxu0 %v383
    %413 = vmatpush.msra.mxu0 %v382
    %414 = vmatmul.f32.gmra.mxu0 %v336
    %v415 = vpop.f32.mrf.mxu0
    %v416 = vadd.f32 0.0, %v415
    %417 = vmatmul.f32.gmra.mxu0 %v337
    %v418 = vpop.f32.mrf.mxu0
    %v419 = vadd.f32 0.0, %v418
    %420 = vmatmul.f32.gmra.mxu0 %v338
    %v421 = vpop.f32.mrf.mxu0
    %v422 = vadd.f32 0.0, %v421
    %423 = vmatmul.f32.gmra.mxu0 %v339
    %v424 = vpop.f32.mrf.mxu0
    %v425 = vadd.f32 0.0, %v424
    %426 = vdwg.mxu0
    %427 = vmatpush.msra.mxu0 %v380
    %428 = vmatpush.msra.mxu0 %v379
    %429 = vmatpush.msra.mxu0 %v378
    %430 = vmatpush.msra.mxu0 %v377
    %431 = vmatpush.msra.mxu0 %v376
    %432 = vmatpush.msra.mxu0 %v375
    %433 = vmatpush.msra.mxu0 %v374
    %434 = vmatpush.msra.mxu0 %v373
    %435 = vmatpush.msra.mxu0 %v372
    %436 = vmatpush.msra.mxu0 %v371
    %437 = vmatpush.msra.mxu0 %v370
    %438 = vmatpush.msra.mxu0 %v369
    %439 = vmatpush.msra.mxu0 %v368
    %440 = vmatpush.msra.mxu0 %v367
    %441 = vmatpush.msra.mxu0 %v366
    %442 = vmatpush.msra.mxu0 %v365
    %443 = vmatmul.f32.gmra.mxu0 %v348
    %v444 = vpop.f32.mrf.mxu0
    %v445 = vadd.f32 %v416, %v444
    %446 = vmatmul.f32.gmra.mxu0 %v349
    %v447 = vpop.f32.mrf.mxu0
    %v448 = vadd.f32 %v419, %v447
    %449 = vmatmul.f32.gmra.mxu0 %v350
    %v450 = vpop.f32.mrf.mxu0
    %v451 = vadd.f32 %v422, %v450
    %452 = vmatmul.f32.gmra.mxu0 %v351
    %v453 = vpop.f32.mrf.mxu0
    %v454 = vadd.f32 %v425, %v453
    %455 = vdwg.mxu0
    %s456 = scalar_lea.vmem [#allocation5], 640
    %v457 = vld [vmem:[%s456] sm:$0xff]
    %v458 = vld [vmem:[%s456 + $0x8] sm:$0xff]
    %v459 = vld [vmem:[%s456 + $0x10] sm:$0xff]
    %v460 = vld [vmem:[%s456 + $0x18] sm:$0xff]
    %v461 = vld [vmem:[%s456 + $0x20] sm:$0xff]
    %v462 = vld [vmem:[%s456 + $0x28] sm:$0xff]
    %v463 = vld [vmem:[%s456 + $0x30] sm:$0xff]
    %v464 = vld [vmem:[%s456 + $0x38] sm:$0xff]
    %v465 = vld [vmem:[%s456 + $0x40] sm:$0xff]
    %v466 = vld [vmem:[%s456 + $0x48] sm:$0xff]
    %v467 = vld [vmem:[%s456 + $0x50] sm:$0xff]
    %v468 = vld [vmem:[%s456 + $0x58] sm:$0xff]
    %v469 = vld [vmem:[%s456 + $0x60] sm:$0xff]
    %v470 = vld [vmem:[%s456 + $0x68] sm:$0xff]
    %v471 = vld [vmem:[%s456 + $0x70] sm:$0xff]
    %v472 = vld [vmem:[%s456 + $0x78] sm:$0xff]
    %473 = vmatpush.msra.mxu0 %v472
    %474 = vmatpush.msra.mxu0 %v471
    %475 = vmatpush.msra.mxu0 %v470
    %476 = vmatpush.msra.mxu0 %v469
    %477 = vmatpush.msra.mxu0 %v468
    %478 = vmatpush.msra.mxu0 %v467
    %479 = vmatpush.msra.mxu0 %v466
    %480 = vmatpush.msra.mxu0 %v465
    %481 = vmatpush.msra.mxu0 %v464
    %482 = vmatpush.msra.mxu0 %v463
    %483 = vmatpush.msra.mxu0 %v462
    %484 = vmatpush.msra.mxu0 %v461
    %485 = vmatpush.msra.mxu0 %v460
    %486 = vmatpush.msra.mxu0 %v459
    %487 = vmatpush.msra.mxu0 %v458
    %488 = vmatpush.msra.mxu0 %v457
    %489 = vmatmul.f32.gmra.mxu0 %v360
    %v490 = vpop.f32.mrf.mxu0
    %v491 = vadd.f32 0.0, %v490
    %492 = vmatmul.f32.gmra.mxu0 %v361
    %v493 = vpop.f32.mrf.mxu0
    %v494 = vadd.f32 0.0, %v493
    %495 = vmatmul.f32.gmra.mxu0 %v362
    %v496 = vpop.f32.mrf.mxu0
    %v497 = vadd.f32 0.0, %v496
    %498 = vmatmul.f32.gmra.mxu0 %v363
    %v499 = vpop.f32.mrf.mxu0
    %v500 = vadd.f32 0.0, %v499
    %501 = vdwg.mxu0
    %v502 = vadd.f32 %v445, %v491
    %v503 = vadd.f32 %v448, %v494
    %v504 = vadd.f32 %v451, %v497
    %v505 = vadd.f32 %v454, %v500
    %v506 = vadd.f32 %v60, %v502
    %v507 = vadd.f32 %v61, %v503
    %v508 = vadd.f32 %v62, %v504
    %v509 = vadd.f32 %v63, %v505
    %510 = vst [vmem:[#allocation8] sm:$0xff] %v506
    %511 = vst [vmem:[#allocation8 + $0x8] sm:$0xff] %v507
    %512 = vst [vmem:[#allocation8 + $0x10] sm:$0xff] %v508
    %513 = vst [vmem:[#allocation8 + $0x18] sm:$0xff] %v509
    // Predicated region
    $region26: #{tpu_custom_call.1} parent=1 // pred_check
      _
    $region27: #{tpu_custom_call.1} parent=1 // pred_check_branch
      %515 = sbr.rel (0) target = $region29
    $region28: #{tpu_custom_call.1} parent=1 // pred_region
      %517 = vsyncadd [#allocation4], 0
      %s518 = sshll.u32 [#allocation8], 4
      %s519 = int_to_ptr.vmem [resolvable:$true] %s518
      %s520 = sshll.u32 %s3, 4
      %s521 = int_to_ptr.hbm [resolvable:$true] %s520
      %526 = dma.vmem_to_hbm [thread:$0]  %s519, 512, %s521, [#allocation4], 128, 128, 8
    $region29: #{tpu_custom_call.1} parent=1 // pred_fallthru
      _
    // Predicated region
    $region30: #{tpu_custom_call.1} parent=1 // pred_check
      _
    $region31: #{tpu_custom_call.1} parent=1 // pred_check_branch
      %528 = sbr.rel (0) target = $region33
    $region32: #{tpu_custom_call.1} parent=1 // pred_region
      %530 = dma.done [#allocation4], 512
    $region33: #{tpu_custom_call.1} parent=1 // pred_fallthru
      _
    %531 = vsyncpa [#allocation3], 1
    %532 = vsyncpa [#allocation6], 1
    %533 = vsyncpa [#allocation4], 1

</llo_original>
